<compile_context>
chip_gen: v5e
topology: v5e:2x2
jax: 0.10.0
libtpu: 0.0.40
codegen_flags: <defaults>
</compile_context>

<pallas_src>
import math

import jax
import jax.numpy as jnp
from jax.experimental import pallas as pl
from jax.experimental.pallas import tpu as pltpu


def _round_up(x, m):
    return (x + m - 1) // m * m


def _make_kernel(num_inputs, scale):
    def kernel(*refs):
        # refs = (x_0, R_0, x_1, R_1, ..., o_ref)
        o_ref = refs[-1]
        acc = jnp.dot(
            refs[0][...], refs[1][...], preferred_element_type=jnp.float32
        ) * scale  # torch: return_list[0] / output_dim ** (1/n)
        for i in range(1, num_inputs):
            acc = acc * jnp.dot(
                refs[2 * i][...], refs[2 * i + 1][...],
                preferred_element_type=jnp.float32,
            )
        o_ref[...] = acc.astype(o_ref.dtype)

    return kernel


def _build_call(n, scale, dims, batch, output_dim, tm, tn, out_dtype,
                op_bytes, out_bytes, vmem_limit, buffered_weights):
    in_specs = []
    for d in dims:
        # x tile: (tm, d) -- tiled along batch only; last dim = full array dim.
        in_specs.append(pl.BlockSpec((tm, d), lambda i, j: (i, 0)))
        # R tile: (d, tn) -- constant batch index, VMEM-resident.
        if buffered_weights:
            in_specs.append(
                pl.BlockSpec((d, tn), lambda i, j: (0, j),
                             pipeline_mode=pl.Buffered(1)))
        else:
            in_specs.append(pl.BlockSpec((d, tn), lambda i, j: (0, j)))

    out_spec = pl.BlockSpec((tm, tn), lambda i, j: (i, j))
    grid = (pl.cdiv(batch, tm), pl.cdiv(output_dim, tn))

    sum_d = sum(dims)
    cost = pl.CostEstimate(
        flops=2 * batch * sum_d * output_dim,
        transcendentals=0,
        bytes_accessed=(batch * sum_d * op_bytes
                        + sum_d * output_dim * op_bytes
                        + batch * output_dim * out_bytes),
    )

    return pl.pallas_call(
        _make_kernel(n, scale),
        out_shape=jax.ShapeDtypeStruct((batch, output_dim), out_dtype),
        grid_spec=pltpu.PrefetchScalarGridSpec(
            num_scalar_prefetch=0,
            grid=grid,
            in_specs=in_specs,
            out_specs=out_spec,
        ),
        compiler_params=pltpu.CompilerParams(
            dimension_semantics=("parallel", "parallel"),
            vmem_limit_bytes=vmem_limit,
        ),
        cost_estimate=cost,
    )


def random_layer(input_list, random_matrices, output_dim=256, tm=None,
                 use_bf16=False):
    """Pallas implementation of RandomLayer.forward."""
    n = len(input_list)
    assert n == len(random_matrices) and n >= 1
    batch = input_list[0].shape[0]
    dims = [x.shape[1] for x in input_list]
    for x in input_list:
        assert x.shape[0] == batch, "all inputs must share the batch dim"
    for x, r in zip(input_list, random_matrices):
        assert r.shape == (x.shape[1], output_dim), "R_i shape mismatch"

    scale = 1.0 / math.pow(float(output_dim), 1.0 / n)

    operand_dtype = jnp.bfloat16 if use_bf16 else jnp.float32
    out_dtype = jnp.bfloat16 if use_bf16 else jnp.float32
    op_bytes = 2 if use_bf16 else 4
    out_bytes = 2 if use_bf16 else 4
    align = 16 if use_bf16 else 8          # match native (16,128)/(8,128) tiles

    # ---- per-generation VMEM budget -----------------------------------------
    try:
        vmem_cap = int(pltpu.get_tpu_info().vmem_capacity_bytes)
    except Exception:
        vmem_cap = 64 * 1024 * 1024        # conservative (v7x-sized) fallback
    usable = vmem_cap * 3 // 4             # ~48 MiB on v7x, ~96 MiB on v5e/v6e

    # ---- tile selection ------------------------------------------------------
    if tm is None:
        tm = min(1024, _round_up(batch, align))
    tm = max(align, _round_up(tm, align))
    tn = output_dim

    def vmem_bytes(tile_m, tile_n):
        sub = align
        b = 0
        for d in dims:
            b += 2 * tile_m * _round_up(d, 128) * op_bytes          # x (2-buf)
            b += _round_up(d, sub) * _round_up(tile_n, 128) * op_bytes  # R (1-buf)
        b += 2 * tile_m * _round_up(tile_n, 128) * out_bytes        # out (2-buf)
        b += tile_m * _round_up(tile_n, 128) * 4                    # f32 acc
        return b

    while tm > align and vmem_bytes(tm, tn) > usable:
        tm = max(align, _round_up(tm // 2, align))

    # v7x has 2 TensorCores sharing HBM: make sure there are >= 2 parallel
    # grid steps whenever possible (harmless on single-TC v5e/v6e).
    if pl.cdiv(batch, tm) < 2 and batch >= 2 * align:
        tm = _round_up(pl.cdiv(batch, 2), align)
    if pl.cdiv(batch, tm) < 2 and output_dim % 256 == 0:
        tn = output_dim // 2               # split N across the two cores

    vmem_limit = int(min(usable, max(32 * 1024 * 1024,
                                     2 * vmem_bytes(tm, tn))))

    # ---- operands (no padding, cast only if needed) --------------------------
    args = []
    for x, r in zip(input_list, random_matrices):
        args.append(x if x.dtype == operand_dtype else x.astype(operand_dtype))
        args.append(r if r.dtype == operand_dtype else r.astype(operand_dtype))

    try:
        call = _build_call(n, scale, dims, batch, output_dim, tm, tn,
                           out_dtype, op_bytes, out_bytes, vmem_limit,
                           buffered_weights=True)
        return call(*args)
    except Exception:
        # Fallback if single-buffered (pl.Buffered(1)) weight specs are not
        # supported by the installed Pallas version.
        call = _build_call(n, scale, dims, batch, output_dim, tm, tn,
                           out_dtype, op_bytes, out_bytes, vmem_limit,
                           buffered_weights=False)
        return call(*args)


def random_layer_ref(input_list, random_matrices, output_dim):
    """Pure-JAX reference mirroring the PyTorch forward."""
    n = len(input_list)
    ys = [jnp.dot(x, r, precision=jax.lax.Precision.HIGHEST)
          for x, r in zip(input_list, random_matrices)]
    out = ys[0] / math.pow(float(output_dim), 1.0 / n)
    for y in ys[1:]:
        out = out * y
    return out


if __name__ == "__main__":
    output_dim = 256
    input_dim_list = [32, 64]

    key = jax.random.PRNGKey(0)
    keys = jax.random.split(key, 2 * len(input_dim_list))

    # torch.randn-equivalent parameter init.
    random_matrices = [
        jax.random.normal(keys[i], (input_dim_list[i], output_dim), jnp.float32)
        for i in range(len(input_dim_list))
    ]

    # Case 1: small shape (single batch tile -> exercises the N-split path).
    batch = 8
    inputs = [
        jax.random.normal(
            keys[len(input_dim_list) + i], (batch, input_dim_list[i]),
            jnp.float32,
        )
        for i in range(len(input_dim_list))
    ]
    out = jax.block_until_ready(
        random_layer(inputs, random_matrices, output_dim=output_dim)
    )
    ref = random_layer_ref(inputs, random_matrices, output_dim)
    assert out.shape == (batch, output_dim)
    assert jnp.allclose(out, ref, rtol=1e-3, atol=1e-3), "mismatch (small)"

    # Case 2: larger, non-multiple batch -> multi-step grid + masked edge block.
    batch2 = 300
    k2 = jax.random.split(jax.random.PRNGKey(1), len(input_dim_list))
    inputs2 = [
        jax.random.normal(k2[i], (batch2, input_dim_list[i]), jnp.float32)
        for i in range(len(input_dim_list))
    ]
    out2 = jax.block_until_ready(
        random_layer(inputs2, random_matrices, output_dim=output_dim)
    )
    ref2 = random_layer_ref(inputs2, random_matrices, output_dim)
    assert out2.shape == (batch2, output_dim)
    assert jnp.allclose(out2, ref2, rtol=1e-3, atol=1e-3), "mismatch (large)"

    # NOTE: use_bf16=True downcasts operands and output; it will not meet the
    # f32 tolerance above and is not asserted here.
    print("KERNEL_OK")
</pallas_src>

<mosaic_0001>
module attributes {stable_mosaic.version = 11 : i64} {
  func.func @kernel(%arg0: i32, %arg1: i32, %arg2: memref<8x32xf32, #tpu.memory_space<vmem>>, %arg3: memref<32x128xf32, #tpu.memory_space<vmem>>, %arg4: memref<8x64xf32, #tpu.memory_space<vmem>>, %arg5: memref<64x128xf32, #tpu.memory_space<vmem>>, %arg6: memref<8x128xf32, #tpu.memory_space<vmem>>) attributes {dimension_semantics = [#tpu.dimension_semantics<parallel>, #tpu.dimension_semantics<parallel>], iteration_bounds = array<i64: 1, 2>, scalar_prefetch = 0 : i64, scratch_operands = 0 : i64, tpu.core_type = #tpu.core_type<tc>, window_params = [{transform_indices = @transform_0, window_bounds = array<i64: 8, 32>}, {pipeline_mode = #tpu.pipeline_mode<synchronous>, transform_indices = @transform_1, window_bounds = array<i64: 32, 128>}, {transform_indices = @transform_2, window_bounds = array<i64: 8, 64>}, {pipeline_mode = #tpu.pipeline_mode<synchronous>, transform_indices = @transform_3, window_bounds = array<i64: 64, 128>}, {transform_indices = @transform_4, window_bounds = array<i64: 8, 128>}]} {
    %c0 = arith.constant 0 : index
    %c0_0 = arith.constant 0 : index
    %0 = vector.load %arg2[%c0, %c0_0] : memref<8x32xf32, #tpu.memory_space<vmem>>, vector<8x32xf32>
    %c0_1 = arith.constant 0 : index
    %c0_2 = arith.constant 0 : index
    %1 = vector.load %arg3[%c0_1, %c0_2] : memref<32x128xf32, #tpu.memory_space<vmem>>, vector<32x128xf32>
    %cst = arith.constant dense<0.000000e+00> : vector<8x128xf32>
    %2 = tpu.matmul %0, %1, %cst {dimension_numbers = #tpu.dot_dimension_numbers<[1], [0], [0], [1], [0, 0, 1, 1], [], []>} : vector<8x32xf32>, vector<32x128xf32>, vector<8x128xf32> -> vector<8x128xf32>
    %cst_3 = arith.constant 6.250000e-02 : f32
    %3 = vector.broadcast %cst_3 : f32 to vector<8x128xf32>
    %4 = arith.mulf %2, %3 : vector<8x128xf32>
    %c0_4 = arith.constant 0 : index
    %c0_5 = arith.constant 0 : index
    %5 = vector.load %arg4[%c0_4, %c0_5] : memref<8x64xf32, #tpu.memory_space<vmem>>, vector<8x64xf32>
    %c0_6 = arith.constant 0 : index
    %c0_7 = arith.constant 0 : index
    %6 = vector.load %arg5[%c0_6, %c0_7] : memref<64x128xf32, #tpu.memory_space<vmem>>, vector<64x128xf32>
    %cst_8 = arith.constant dense<0.000000e+00> : vector<8x128xf32>
    %7 = tpu.matmul %5, %6, %cst_8 {dimension_numbers = #tpu.dot_dimension_numbers<[1], [0], [0], [1], [0, 0, 1, 1], [], []>} : vector<8x64xf32>, vector<64x128xf32>, vector<8x128xf32> -> vector<8x128xf32>
    %8 = arith.mulf %4, %7 : vector<8x128xf32>
    %c0_9 = arith.constant 0 : index
    %c0_10 = arith.constant 0 : index
    %9 = vector.load %arg6[%c0_9, %c0_10] : memref<8x128xf32, #tpu.memory_space<vmem>>, vector<8x128xf32>
    tpu.vector_store %arg6[%c0_9, %c0_10], %8 {strides = array<i32>} : memref<8x128xf32, #tpu.memory_space<vmem>>, vector<8x128xf32>,
    return
  }
  func.func @transform_0(%arg0: i32, %arg1: i32) -> (i32, i32) {
    %c0_i32 = arith.constant 0 : i32
    %c0_i32_0 = arith.constant 0 : i32
    return %arg0, %c0_i32 : i32, i32
  }
  func.func @transform_1(%arg0: i32, %arg1: i32) -> (i32, i32) {
    %c0_i32 = arith.constant 0 : i32
    %c0_i32_0 = arith.constant 0 : i32
    return %c0_i32, %arg1 : i32, i32
  }
  func.func @transform_2(%arg0: i32, %arg1: i32) -> (i32, i32) {
    %c0_i32 = arith.constant 0 : i32
    %c0_i32_0 = arith.constant 0 : i32
    return %arg0, %c0_i32 : i32, i32
  }
  func.func @transform_3(%arg0: i32, %arg1: i32) -> (i32, i32) {
    %c0_i32 = arith.constant 0 : i32
    %c0_i32_0 = arith.constant 0 : i32
    return %c0_i32, %arg1 : i32, i32
  }
  func.func @transform_4(%arg0: i32, %arg1: i32) -> (i32, i32) {
    %c0_i32 = arith.constant 0 : i32
    return %arg0, %arg1 : i32, i32
  }
}

module attributes {stable_mosaic.version = 11 : i64} {
  func.func @kernel(%arg0: i32, %arg1: i32, %arg2: memref<8x32xf32, #tpu.memory_space<vmem>>, %arg3: memref<32x128xf32, #tpu.memory_space<vmem>>, %arg4: memref<8x64xf32, #tpu.memory_space<vmem>>, %arg5: memref<64x128xf32, #tpu.memory_space<vmem>>, %arg6: memref<8x128xf32, #tpu.memory_space<vmem>>) attributes {dimension_semantics = [#tpu.dimension_semantics<parallel>, #tpu.dimension_semantics<parallel>], iteration_bounds = array<i64: 1, 2>, scalar_prefetch = 0 : i64, scratch_operands = 0 : i64, tpu.core_type = #tpu.core_type<tc>, window_params = [{transform_indices = @transform_0, window_bounds = array<i64: 8, 32>}, {transform_indices = @transform_1, window_bounds = array<i64: 32, 128>}, {transform_indices = @transform_2, window_bounds = array<i64: 8, 64>}, {transform_indices = @transform_3, window_bounds = array<i64: 64, 128>}, {transform_indices = @transform_4, window_bounds = array<i64: 8, 128>}]} {
    %c0 = arith.constant 0 : index
    %c0_0 = arith.constant 0 : index
    %0 = vector.load %arg2[%c0, %c0_0] : memref<8x32xf32, #tpu.memory_space<vmem>>, vector<8x32xf32>
    %c0_1 = arith.constant 0 : index
    %c0_2 = arith.constant 0 : index
    %1 = vector.load %arg3[%c0_1, %c0_2] : memref<32x128xf32, #tpu.memory_space<vmem>>, vector<32x128xf32>
    %cst = arith.constant dense<0.000000e+00> : vector<8x128xf32>
    %2 = tpu.matmul %0, %1, %cst {dimension_numbers = #tpu.dot_dimension_numbers<[1], [0], [0], [1], [0, 0, 1, 1], [], []>} : vector<8x32xf32>, vector<32x128xf32>, vector<8x128xf32> -> vector<8x128xf32>
    %cst_3 = arith.constant 6.250000e-02 : f32
    %3 = vector.broadcast %cst_3 : f32 to vector<8x128xf32>
    %4 = arith.mulf %2, %3 : vector<8x128xf32>
    %c0_4 = arith.constant 0 : index
    %c0_5 = arith.constant 0 : index
    %5 = vector.load %arg4[%c0_4, %c0_5] : memref<8x64xf32, #tpu.memory_space<vmem>>, vector<8x64xf32>
    %c0_6 = arith.constant 0 : index
    %c0_7 = arith.constant 0 : index
    %6 = vector.load %arg5[%c0_6, %c0_7] : memref<64x128xf32, #tpu.memory_space<vmem>>, vector<64x128xf32>
    %cst_8 = arith.constant dense<0.000000e+00> : vector<8x128xf32>
    %7 = tpu.matmul %5, %6, %cst_8 {dimension_numbers = #tpu.dot_dimension_numbers<[1], [0], [0], [1], [0, 0, 1, 1], [], []>} : vector<8x64xf32>, vector<64x128xf32>, vector<8x128xf32> -> vector<8x128xf32>
    %8 = arith.mulf %4, %7 : vector<8x128xf32>
    %c0_9 = arith.constant 0 : index
    %c0_10 = arith.constant 0 : index
    %9 = vector.load %arg6[%c0_9, %c0_10] : memref<8x128xf32, #tpu.memory_space<vmem>>, vector<8x128xf32>
    tpu.vector_store %arg6[%c0_9, %c0_10], %8 {strides = array<i32>} : memref<8x128xf32, #tpu.memory_space<vmem>>, vector<8x128xf32>,
    return
  }
  func.func @transform_0(%arg0: i32, %arg1: i32) -> (i32, i32) {
    %c0_i32 = arith.constant 0 : i32
    %c0_i32_0 = arith.constant 0 : i32
    return %arg0, %c0_i32 : i32, i32
  }
  func.func @transform_1(%arg0: i32, %arg1: i32) -> (i32, i32) {
    %c0_i32 = arith.constant 0 : i32
    %c0_i32_0 = arith.constant 0 : i32
    return %c0_i32, %arg1 : i32, i32
  }
  func.func @transform_2(%arg0: i32, %arg1: i32) -> (i32, i32) {
    %c0_i32 = arith.constant 0 : i32
    %c0_i32_0 = arith.constant 0 : i32
    return %arg0, %c0_i32 : i32, i32
  }
  func.func @transform_3(%arg0: i32, %arg1: i32) -> (i32, i32) {
    %c0_i32 = arith.constant 0 : i32
    %c0_i32_0 = arith.constant 0 : i32
    return %c0_i32, %arg1 : i32, i32
  }
  func.func @transform_4(%arg0: i32, %arg1: i32) -> (i32, i32) {
    %c0_i32 = arith.constant 0 : i32
    return %arg0, %arg1 : i32, i32
  }
}

</mosaic_0001>

<llo_original>
// kernel: tpu_custom_call.1
$region0: #{tpu_custom_call.1}
  #allocation0 [shape = 'u32[]', space=smem, size = 0x4, offset = 0x4, fixed_abs, tag = 'smem constant byte address 0x4 - core index']
  #allocation1 [shape = 'u32[72,128]{1,0:T(1,128)}', space=vmem, size = 0x9000, scoped, tag = 'internal scratch']
  %s0 = inlined_call_operand.hbm [shape: f32[8,32], index: 0, kind: input, shape index: {}]
  %s1 = inlined_call_operand.hbm [shape: f32[32,256], index: 1, kind: input, shape index: {}]
  %s2 = inlined_call_operand.hbm [shape: f32[8,64], index: 2, kind: input, shape index: {}]
  %s3 = inlined_call_operand.hbm [shape: f32[64,256], index: 3, kind: input, shape index: {}]
  %s4 = inlined_call_operand.hbm [shape: f32[8,256], index: 4, kind: output, shape index: {}]
  %s5 = sld [smem:[#allocation0]]
  $region65: #{tpu_custom_call.1} parent=0
    _
  %s7 = ssub.s32 1, %s5
  %s8 = scalar_select 0, %s7, %s5
  $region1: #{tpu_custom_call.1} parent=0
    #allocation2 [shape = 'u8[4096]{0}', space=vmem, size = 0x1000, scoped, tag = 'input window, operand 0, single buffered']
    #allocation3 [shape = 's32[2]{0}', space=sflag, size = 0x8, scoped, tag = 'scoped memory for tpu_custom_call.1']
    #allocation4 [shape = 's32[2]{0}', space=sflag, size = 0x8, scoped, tag = 'scoped memory for tpu_custom_call.1']
    #allocation5 [shape = 'u8[16384]{0}', space=vmem, size = 0x4000, scoped, tag = 'input window, operand 1, single buffered']
    #allocation6 [shape = 's32[1]{0}', space=sflag, size = 0x4, scoped, tag = 'scoped memory for tpu_custom_call.1']
    #allocation7 [shape = 'u8[4096]{0}', space=vmem, size = 0x1000, scoped, tag = 'input window, operand 2, single buffered']
    #allocation8 [shape = 'u8[32768]{0}', space=vmem, size = 0x8000, scoped, tag = 'input window, operand 3, single buffered']
    #allocation9 [shape = 's32[1]{0}', space=sflag, size = 0x4, scoped, tag = 'scoped memory for tpu_custom_call.1']
    #allocation10 [shape = 'u8[8192]{0}', space=vmem, size = 0x2000, scoped, tag = 'output window, operand 0']
    %9 = vsyncpa [#allocation3], 0
    %10 = vsyncpa [#allocation6], 0
    %11 = vsyncpa [#allocation9], 0
    %12 = vsyncpa [#allocation4], 0
    %s13 = scalar_lea.sflag [#allocation4], 1
    %14 = vsyncpa %s13, 0
    loop: start=0, step=1, limit=4
    $region2: #{tpu_custom_call.1} parent=1 // loop_pre_header
      _
    $region3: #{tpu_custom_call.1} parent=1 // loop_header
      %s16 = sphi 0, %s20
      %p17 = scmp.ge.s32.totalorder %s16, 4
      %s23 = sphi 0, %s35
      %s24 = sphi 0, %s31
      %s25 = sphi 0, %s23
      %s26 = sphi 0, %s24
      %s27 = sphi 0, %s25
      %s28 = sphi 0, %s26
      %s38 = sphi 0, %s40
      %s41 = sphi 0, %s38
      %s42 = sphi 0, %s41
      %s58 = sphi 0, %s42
      %s64 = sphi 0, %s66
      %s67 = sphi 0, %s64
      %s68 = sphi 0, %s67
      %s84 = sphi 0, %s68
      %s90 = sphi 0, %s92
      %s93 = sphi 0, %s90
      %s94 = sphi 0, %s93
      %s110 = sphi 0, %s94
      %s116 = sphi 0, %s118
      %s119 = sphi 0, %s116
      %s120 = sphi 0, %s119
      %s136 = sphi 0, %s120
      %s144 = sphi 0, %s146
      %s147 = sphi 0, %s144
      %s148 = sphi 0, %s147
      %s164 = sphi 0, %s148
    $region4: #{tpu_custom_call.1} parent=1 // loop_header_branch
      %19 = sbr.rel (%p17) target = $region8
    $region5: #{tpu_custom_call.1} parent=1 // loop_body
      %s21 = ssub.s32 %s16, 1
      %s22 = ssub.s32 %s16, 2
      %s29 = sadd.s32 1, %s24
      %p30 = scmp.ge.s32.totalorder %s29, 2
      %s31 = scalar_select %p30, 0, %s29
      %s32 = sadd.s32 1, %s23
      %s33 = scalar_select %p30, %s32, %s23
      %p34 = scmp.ge.s32.totalorder %s33, 1
      %s35 = scalar_select %p34, 0, %s33
      %s36 = ssub.s32 %s23, %s35
      %p37 = scmp.eq.s32.totalorder %s36, 0
      %s39 = sadd.s32 %s38, 1
      %s40 = scalar_select %p37, %s38, %s39
      %p43 = pneg %p37
      %p44 = scmp.eq.s32.totalorder %s16, 1
      %p45 = por %p43, %p44
      %p46 = scmp.ne.s32.totalorder %s38, %s41
      %p47 = scmp.eq.s32.totalorder %s16, 0
      %p48 = por %p46, %p47
      %p49 = scmp.ne.s32.totalorder %s38, %s41
      %p50 = scmp.eq.s32.totalorder %s21, 1
      %p51 = por %p49, %p50
      %p52 = scmp.ne.s32.totalorder %s41, %s42
      %p53 = scmp.eq.s32.totalorder %s21, 0
      %p54 = por %p52, %p53
      %p55 = scmp.ne.s32.totalorder %s41, %s42
      %p56 = scmp.eq.s32.totalorder %s22, 1
      %p57 = por %p55, %p56
      %p59 = scmp.ne.s32.totalorder %s42, %s58
      %p60 = scmp.eq.s32.totalorder %s22, 0
      %p61 = por %p59, %p60
      %s62 = ssub.s32 %s24, %s31
      %p63 = scmp.eq.s32.totalorder %s62, 0
      %s65 = sadd.s32 %s64, 1
      %s66 = scalar_select %p63, %s64, %s65
      %p69 = pneg %p63
      %p70 = scmp.eq.s32.totalorder %s16, 1
      %p71 = por %p69, %p70
      %p72 = scmp.ne.s32.totalorder %s64, %s67
      %p73 = scmp.eq.s32.totalorder %s16, 0
      %p74 = por %p72, %p73
      %p75 = scmp.ne.s32.totalorder %s64, %s67
      %p76 = scmp.eq.s32.totalorder %s21, 1
      %p77 = por %p75, %p76
      %p78 = scmp.ne.s32.totalorder %s67, %s68
      %p79 = scmp.eq.s32.totalorder %s21, 0
      %p80 = por %p78, %p79
      %p81 = scmp.ne.s32.totalorder %s67, %s68
      %p82 = scmp.eq.s32.totalorder %s22, 1
      %p83 = por %p81, %p82
      %p85 = scmp.ne.s32.totalorder %s68, %s84
      %p86 = scmp.eq.s32.totalorder %s22, 0
      %p87 = por %p85, %p86
      %s88 = ssub.s32 %s23, %s35
      %p89 = scmp.eq.s32.totalorder %s88, 0
      %s91 = sadd.s32 %s90, 1
      %s92 = scalar_select %p89, %s90, %s91
      %p95 = pneg %p89
      %p96 = scmp.eq.s32.totalorder %s16, 1
      %p97 = por %p95, %p96
      %p98 = scmp.ne.s32.totalorder %s90, %s93
      %p99 = scmp.eq.s32.totalorder %s16, 0
      %p100 = por %p98, %p99
      %p101 = scmp.ne.s32.totalorder %s90, %s93
      %p102 = scmp.eq.s32.totalorder %s21, 1
      %p103 = por %p101, %p102
      %p104 = scmp.ne.s32.totalorder %s93, %s94
      %p105 = scmp.eq.s32.totalorder %s21, 0
      %p106 = por %p104, %p105
      %p107 = scmp.ne.s32.totalorder %s93, %s94
      %p108 = scmp.eq.s32.totalorder %s22, 1
      %p109 = por %p107, %p108
      %p111 = scmp.ne.s32.totalorder %s94, %s110
      %p112 = scmp.eq.s32.totalorder %s22, 0
      %p113 = por %p111, %p112
      %s114 = ssub.s32 %s24, %s31
      %p115 = scmp.eq.s32.totalorder %s114, 0
      %s117 = sadd.s32 %s116, 1
      %s118 = scalar_select %p115, %s116, %s117
      %p121 = pneg %p115
      %p122 = scmp.eq.s32.totalorder %s16, 1
      %p123 = por %p121, %p122
      %p124 = scmp.ne.s32.totalorder %s116, %s119
      %p125 = scmp.eq.s32.totalorder %s16, 0
      %p126 = por %p124, %p125
      %p127 = scmp.ne.s32.totalorder %s116, %s119
      %p128 = scmp.eq.s32.totalorder %s21, 1
      %p129 = por %p127, %p128
      %p130 = scmp.ne.s32.totalorder %s119, %s120
      %p131 = scmp.eq.s32.totalorder %s21, 0
      %p132 = por %p130, %p131
      %p133 = scmp.ne.s32.totalorder %s119, %s120
      %p134 = scmp.eq.s32.totalorder %s22, 1
      %p135 = por %p133, %p134
      %p137 = scmp.ne.s32.totalorder %s120, %s136
      %p138 = scmp.eq.s32.totalorder %s22, 0
      %p139 = por %p137, %p138
      %s140 = ssub.s32 %s23, %s35
      %s141 = ssub.s32 %s24, %s31
      %s142 = sor.u32 %s140, %s141
      %p143 = scmp.eq.s32.totalorder %s142, 0
      %s145 = sadd.s32 %s144, 1
      %s146 = scalar_select %p143, %s144, %s145
      %p149 = pneg %p143
      %p150 = scmp.eq.s32.totalorder %s16, 1
      %p151 = por %p149, %p150
      %p152 = scmp.ne.s32.totalorder %s144, %s147
      %p153 = scmp.eq.s32.totalorder %s16, 0
      %p154 = por %p152, %p153
      %p155 = scmp.ne.s32.totalorder %s144, %s147
      %p156 = scmp.eq.s32.totalorder %s21, 1
      %p157 = por %p155, %p156
      %p158 = scmp.ne.s32.totalorder %s147, %s148
      %p159 = scmp.eq.s32.totalorder %s21, 0
      %p160 = por %p158, %p159
      %p161 = scmp.ne.s32.totalorder %s147, %s148
      %p162 = scmp.eq.s32.totalorder %s22, 1
      %p163 = por %p161, %p162
      %p165 = scmp.ne.s32.totalorder %s148, %s164
      %p166 = scmp.eq.s32.totalorder %s22, 0
      %p167 = por %p165, %p166
      %p168 = scmp.le.s32.totalorder 1, %s16
      %p169 = scmp.lt.s32.totalorder %s16, 3
      %p170 = pnand %p168, %p169
      %p171 = pneg %p170
      // Predicated region
      $region9: #{tpu_custom_call.1} parent=5 // pred_check
        _
      $region10: #{tpu_custom_call.1} parent=5 // pred_check_branch
        %173 = sbr.rel (%p170) target = $region12
      $region11: #{tpu_custom_call.1} parent=5 // pred_region
        %s174 = ssub.s32 %s16, 1
        // Predicated region
        $region13: #{tpu_custom_call.1} parent=11 // pred_check
          %p175 = pneg %p54
        $region14: #{tpu_custom_call.1} parent=11 // pred_check_branch
          %177 = sbr.rel (%p175) target = $region16
        $region15: #{tpu_custom_call.1} parent=11 // pred_region
          %179 = vsyncadd [#allocation3], 0
          %s180 = smul.addr %s25, 8
          %s181 = scalar_lea.hbm %s0, %s180
          %s183 = sshll.u32 %s181, 4
          %s184 = int_to_ptr.hbm [resolvable:$true] %s183
          %s185 = sshll.u32 [#allocation2], 4
          %s186 = int_to_ptr.vmem [resolvable:$true] %s185
          %188 = dma.hbm_to_vmem [thread:$0]  %s184, 128, %s186, [#allocation3]
        $region16: #{tpu_custom_call.1} parent=11 // pred_fallthru
          _
        // Predicated region
        $region17: #{tpu_custom_call.1} parent=11 // pred_check
          %p189 = pneg %p80
        $region18: #{tpu_custom_call.1} parent=11 // pred_check_branch
          %191 = sbr.rel (%p189) target = $region20
        $region19: #{tpu_custom_call.1} parent=11 // pred_region
          %193 = vsyncadd [#allocation6], 0
          %s194 = smul.addr %s26, 8
          %s195 = scalar_lea.hbm %s1, %s194
          %s196 = sshll.u32 %s195, 4
          %s197 = int_to_ptr.hbm [resolvable:$true] %s196
          %s198 = sshll.u32 [#allocation5], 4
          %s199 = int_to_ptr.vmem [resolvable:$true] %s198
          %204 = dma.hbm_to_vmem [thread:$0]  %s197, 512, %s199, [#allocation6], 256, 128, 8
        $region20: #{tpu_custom_call.1} parent=11 // pred_fallthru
          _
        // Predicated region
        $region21: #{tpu_custom_call.1} parent=11 // pred_check
          %p205 = pneg %p106
        $region22: #{tpu_custom_call.1} parent=11 // pred_check_branch
          %207 = sbr.rel (%p205) target = $region24
        $region23: #{tpu_custom_call.1} parent=11 // pred_region
          %209 = vsyncadd [#allocation6], 0
          %s210 = smul.addr %s25, 8
          %s211 = scalar_lea.hbm %s2, %s210
          %s213 = sshll.u32 %s211, 4
          %s214 = int_to_ptr.hbm [resolvable:$true] %s213
          %s215 = sshll.u32 [#allocation7], 4
          %s216 = int_to_ptr.vmem [resolvable:$true] %s215
          %218 = dma.hbm_to_vmem [thread:$0]  %s214, 128, %s216, [#allocation6]
        $region24: #{tpu_custom_call.1} parent=11 // pred_fallthru
          _
        // Predicated region
        $region25: #{tpu_custom_call.1} parent=11 // pred_check
          %p219 = pneg %p132
        $region26: #{tpu_custom_call.1} parent=11 // pred_check_branch
          %221 = sbr.rel (%p219) target = $region28
        $region27: #{tpu_custom_call.1} parent=11 // pred_region
          %223 = vsyncadd [#allocation9], 0
          %s224 = smul.addr %s26, 8
          %s225 = scalar_lea.hbm %s3, %s224
          %s226 = sshll.u32 %s225, 4
          %s227 = int_to_ptr.hbm [resolvable:$true] %s226
          %s228 = sshll.u32 [#allocation8], 4
          %s229 = int_to_ptr.vmem [resolvable:$true] %s228
          %234 = dma.hbm_to_vmem [thread:$0]  %s227, 1024, %s229, [#allocation9], 256, 128, 8
        $region28: #{tpu_custom_call.1} parent=11 // pred_fallthru
          _
      $region12: #{tpu_custom_call.1} parent=5 // pred_fallthru
        _
      %p235 = scmp.lt.s32.totalorder %s16, 2
      // Predicated region
      $region29: #{tpu_custom_call.1} parent=5 // pred_check
        %p236 = pneg %p235
      $region30: #{tpu_custom_call.1} parent=5 // pred_check_branch
        %238 = sbr.rel (%p236) target = $region32
      $region31: #{tpu_custom_call.1} parent=5 // pred_region
        _
      $region32: #{tpu_custom_call.1} parent=5 // pred_fallthru
        _
      %p239 = scmp.le.s32.totalorder 1, %s16
      %p240 = scmp.lt.s32.totalorder %s16, 3
      %p241 = pnand %p239, %p240
      %p242 = pneg %p241
      // Predicated region
      $region33: #{tpu_custom_call.1} parent=5 // pred_check
        _
      $region34: #{tpu_custom_call.1} parent=5 // pred_check_branch
        %244 = sbr.rel (%p241) target = $region36
      $region35: #{tpu_custom_call.1} parent=5 // pred_region
        %s245 = ssub.s32 %s16, 1
        // Predicated region
        $region37: #{tpu_custom_call.1} parent=35 // pred_check
          %p246 = pneg %p54
        $region38: #{tpu_custom_call.1} parent=35 // pred_check_branch
          %248 = sbr.rel (%p246) target = $region40
        $region39: #{tpu_custom_call.1} parent=35 // pred_region
          %250 = dma.done [#allocation3], 128
        $region40: #{tpu_custom_call.1} parent=35 // pred_fallthru
          _
        // Predicated region
        $region41: #{tpu_custom_call.1} parent=35 // pred_check
          %p251 = pneg %p80
        $region42: #{tpu_custom_call.1} parent=35 // pred_check_branch
          %253 = sbr.rel (%p251) target = $region44
        $region43: #{tpu_custom_call.1} parent=35 // pred_region
          %255 = dma.done [#allocation6], 512
        $region44: #{tpu_custom_call.1} parent=35 // pred_fallthru
          _
        // Predicated region
        $region45: #{tpu_custom_call.1} parent=35 // pred_check
          %p256 = pneg %p106
        $region46: #{tpu_custom_call.1} parent=35 // pred_check_branch
          %258 = sbr.rel (%p256) target = $region48
        $region47: #{tpu_custom_call.1} parent=35 // pred_region
          %260 = dma.done [#allocation6], 128
        $region48: #{tpu_custom_call.1} parent=35 // pred_fallthru
          _
        // Predicated region
        $region49: #{tpu_custom_call.1} parent=35 // pred_check
          %p261 = pneg %p132
        $region50: #{tpu_custom_call.1} parent=35 // pred_check_branch
          %263 = sbr.rel (%p261) target = $region52
        $region51: #{tpu_custom_call.1} parent=35 // pred_region
          %265 = dma.done [#allocation9], 1024
        $region52: #{tpu_custom_call.1} parent=35 // pred_fallthru
          _
        %p266 = pneg %p54
        %p267 = pneg %p51
        %p268 = pneg %p80
        %p269 = pneg %p77
        %p270 = pneg %p106
        %p271 = pneg %p103
        %p272 = pneg %p132
        %p273 = pneg %p129
        %p274 = pneg %p160
        %p275 = pneg %p157
        %s276 = sand.u32 %s147, 1
        %s277 = scalar_lea.sflag [#allocation4], %s276
        %s278 = sand.u32 %s147, 1
        %s279 = smul.addr %s278, 8
        %s280 = scalar_lea.vmem [#allocation10], %s279
        %v281 = vld [vmem:[#allocation2] sm:$0xff]
        %v282 = vld [vmem:[#allocation5] sm:$0xff]
        %v283 = vld [vmem:[#allocation5 + $0x8] sm:$0xff]
        %v284 = vld [vmem:[#allocation5 + $0x10] sm:$0xff]
        %v285 = vld [vmem:[#allocation5 + $0x18] sm:$0xff]
        %vm286 = vcmask 261120
        %v288 = vsel %vm286, %v281, 0
        %290 = vmatpush.msra.mxu0 0.0
        %291 = vmatpush.msra.mxu0 0.0
        %292 = vmatpush.msra.mxu0 0.0
        %293 = vmatpush.msra.mxu0 0.0
        %294 = vmatpush.msra.mxu0 0.0
        %295 = vmatpush.msra.mxu0 0.0
        %296 = vmatpush.msra.mxu0 0.0
        %297 = vmatpush.msra.mxu0 0.0
        %298 = vmatpush.msra.mxu0 0.0
        %299 = vmatpush.msra.mxu0 0.0
        %300 = vmatpush.msra.mxu0 0.0
        %301 = vmatpush.msra.mxu0 0.0
        %302 = vmatpush.msra.mxu0 %v285
        %303 = vmatpush.msra.mxu0 %v284
        %304 = vmatpush.msra.mxu0 %v283
        %305 = vmatpush.msra.mxu0 %v282
        %306 = vmatmul.f32.gmra.mxu0 %v288
        %v307 = vpop.f32.mrf.mxu0
        %v308 = vadd.f32 0.0, %v307
        %309 = vdwg.mxu0
        %v310 = vmul.f32 %v308, 0.0625
        %v311 = vld [vmem:[#allocation7] sm:$0xff]
        %v312 = vld [vmem:[#allocation8] sm:$0xff]
        %v313 = vld [vmem:[#allocation8 + $0x8] sm:$0xff]
        %v314 = vld [vmem:[#allocation8 + $0x10] sm:$0xff]
        %v315 = vld [vmem:[#allocation8 + $0x18] sm:$0xff]
        %v316 = vld [vmem:[#allocation8 + $0x20] sm:$0xff]
        %v317 = vld [vmem:[#allocation8 + $0x28] sm:$0xff]
        %v318 = vld [vmem:[#allocation8 + $0x30] sm:$0xff]
        %v319 = vld [vmem:[#allocation8 + $0x38] sm:$0xff]
        %vm320 = vcmask 523264
        %v322 = vsel %vm320, %v311, 0
        %324 = vmatpush.msra.mxu0 0.0
        %325 = vmatpush.msra.mxu0 0.0
        %326 = vmatpush.msra.mxu0 0.0
        %327 = vmatpush.msra.mxu0 0.0
        %328 = vmatpush.msra.mxu0 0.0
        %329 = vmatpush.msra.mxu0 0.0
        %330 = vmatpush.msra.mxu0 0.0
        %331 = vmatpush.msra.mxu0 0.0
        %332 = vmatpush.msra.mxu0 %v319
        %333 = vmatpush.msra.mxu0 %v318
        %334 = vmatpush.msra.mxu0 %v317
        %335 = vmatpush.msra.mxu0 %v316
        %336 = vmatpush.msra.mxu0 %v315
        %337 = vmatpush.msra.mxu0 %v314
        %338 = vmatpush.msra.mxu0 %v313
        %339 = vmatpush.msra.mxu0 %v312
        %340 = vmatmul.f32.gmra.mxu0 %v322
        %v341 = vpop.f32.mrf.mxu0
        %v342 = vadd.f32 0.0, %v341
        %343 = vdwg.mxu0
        %v344 = vmul.f32 %v310, %v342
        %345 = vst [vmem:[%s280] sm:$0xff] %v344
        %s346 = sand.u32 %s147, 1
        %s347 = scalar_lea.sflag [#allocation4], %s346
        %s348 = sand.u32 %s147, 1
        %s349 = smul.addr %s348, 8
        %s350 = scalar_lea.vmem [#allocation10], %s349
        // Predicated region
        $region53: #{tpu_custom_call.1} parent=35 // pred_check
          %p351 = pneg %p157
        $region54: #{tpu_custom_call.1} parent=35 // pred_check_branch
          %353 = sbr.rel (%p351) target = $region56
        $region55: #{tpu_custom_call.1} parent=35 // pred_region
          %355 = vsyncadd %s347, 0
          %s356 = smul.addr %s25, 2
          %s357 = sadd.s32 %s26, %s356
          %s358 = smul.addr %s357, 8
          %s359 = scalar_lea.hbm %s4, %s358
          %s361 = sshll.u32 %s350, 4
          %s362 = int_to_ptr.vmem [resolvable:$true] %s361
          %s363 = sshll.u32 %s359, 4
          %s364 = int_to_ptr.hbm [resolvable:$true] %s363
          %366 = dma.vmem_to_hbm [thread:$0]  %s362, 128, %s364, %s347
        $region56: #{tpu_custom_call.1} parent=35 // pred_fallthru
          _
      $region36: #{tpu_custom_call.1} parent=5 // pred_fallthru
        _
      %p367 = scmp.le.s32.totalorder 2, %s16
      // Predicated region
      $region57: #{tpu_custom_call.1} parent=5 // pred_check
        %p368 = pneg %p367
      $region58: #{tpu_custom_call.1} parent=5 // pred_check_branch
        %370 = sbr.rel (%p368) target = $region60
      $region59: #{tpu_custom_call.1} parent=5 // pred_region
        %s371 = ssub.s32 %s16, 2
        // Predicated region
        $region61: #{tpu_custom_call.1} parent=59 // pred_check
          %p372 = pneg %p163
        $region62: #{tpu_custom_call.1} parent=59 // pred_check_branch
          %374 = sbr.rel (%p372) target = $region64
        $region63: #{tpu_custom_call.1} parent=59 // pred_region
          %s375 = sand.u32 %s148, 1
          %s376 = scalar_lea.sflag [#allocation4], %s375
          %s377 = sand.u32 %s148, 1
          %s378 = smul.addr %s377, 8
          %s379 = scalar_lea.vmem [#allocation10], %s378
          %381 = dma.done %s376, 128
        $region64: #{tpu_custom_call.1} parent=59 // pred_fallthru
          _
      $region60: #{tpu_custom_call.1} parent=5 // pred_fallthru
        _
    $region6: #{tpu_custom_call.1} parent=1 // loop_footer
      %s20 = sadd.s32 1, %s16
    $region7: #{tpu_custom_call.1} parent=1 // loop_footer_branch
      %15 = sbr.rel target = $region3
    $region8: #{tpu_custom_call.1} parent=1 // loop_exit
      _
    %382 = vsyncpa [#allocation3], 1
    %s383 = scalar_lea.sflag [#allocation3], 1
    %384 = vsyncpa %s383, 1
    %385 = vsyncpa [#allocation6], 1
    %386 = vsyncpa [#allocation9], 1
    %387 = vsyncpa [#allocation4], 1
    %s388 = scalar_lea.sflag [#allocation4], 1
    %389 = vsyncpa %s388, 1

// kernel: tpu_custom_call.1
$region0: #{tpu_custom_call.1}
  #allocation0 [shape = 'u32[]', space=smem, size = 0x4, offset = 0x4, fixed_abs, tag = 'smem constant byte address 0x4 - core index']
  #allocation1 [shape = 'u32[72,128]{1,0:T(1,128)}', space=vmem, size = 0x9000, scoped, tag = 'internal scratch']
  %s0 = inlined_call_operand.hbm [shape: f32[8,32], index: 0, kind: input, shape index: {}]
  %s1 = inlined_call_operand.hbm [shape: f32[32,256], index: 1, kind: input, shape index: {}]
  %s2 = inlined_call_operand.hbm [shape: f32[8,64], index: 2, kind: input, shape index: {}]
  %s3 = inlined_call_operand.hbm [shape: f32[64,256], index: 3, kind: input, shape index: {}]
  %s4 = inlined_call_operand.hbm [shape: f32[8,256], index: 4, kind: output, shape index: {}]
  %s5 = sld [smem:[#allocation0]]
  $region65: #{tpu_custom_call.1} parent=0
    _
  %s7 = ssub.s32 1, %s5
  %s8 = scalar_select 0, %s7, %s5
  $region1: #{tpu_custom_call.1} parent=0
    #allocation2 [shape = 'u8[4096]{0}', space=vmem, size = 0x1000, scoped, tag = 'input window, operand 0, single buffered']
    #allocation3 [shape = 's32[2]{0}', space=sflag, size = 0x8, scoped, tag = 'scoped memory for tpu_custom_call.1']
    #allocation4 [shape = 's32[2]{0}', space=sflag, size = 0x8, scoped, tag = 'scoped memory for tpu_custom_call.1']
    #allocation5 [shape = 'u8[32768]{0}', space=vmem, size = 0x8000, scoped, tag = 'input window, operand 1']
    #allocation6 [shape = 's32[2]{0}', space=sflag, size = 0x8, scoped, tag = 'scoped memory for tpu_custom_call.1']
    #allocation7 [shape = 'u8[4096]{0}', space=vmem, size = 0x1000, scoped, tag = 'input window, operand 2, single buffered']
    #allocation8 [shape = 'u8[65536]{0}', space=vmem, size = 0x10000, scoped, tag = 'input window, operand 3']
    #allocation9 [shape = 's32[2]{0}', space=sflag, size = 0x8, scoped, tag = 'scoped memory for tpu_custom_call.1']
    #allocation10 [shape = 'u8[8192]{0}', space=vmem, size = 0x2000, scoped, tag = 'output window, operand 0']
    %9 = vsyncpa [#allocation3], 0
    %10 = vsyncpa [#allocation6], 0
    %s11 = scalar_lea.sflag [#allocation6], 1
    %12 = vsyncpa %s11, 0
    %13 = vsyncpa [#allocation9], 0
    %s14 = scalar_lea.sflag [#allocation9], 1
    %15 = vsyncpa %s14, 0
    %16 = vsyncpa [#allocation4], 0
    %s17 = scalar_lea.sflag [#allocation4], 1
    %18 = vsyncpa %s17, 0
    loop: start=0, step=1, limit=4
    $region2: #{tpu_custom_call.1} parent=1 // loop_pre_header
      _
    $region3: #{tpu_custom_call.1} parent=1 // loop_header
      %s20 = sphi 0, %s24
      %p21 = scmp.ge.s32.totalorder %s20, 4
      %s27 = sphi 0, %s39
      %s28 = sphi 0, %s35
      %s29 = sphi 0, %s27
      %s30 = sphi 0, %s28
      %s31 = sphi 0, %s29
      %s32 = sphi 0, %s30
      %s42 = sphi 0, %s44
      %s45 = sphi 0, %s42
      %s46 = sphi 0, %s45
      %s62 = sphi 0, %s46
      %s68 = sphi 0, %s70
      %s71 = sphi 0, %s68
      %s72 = sphi 0, %s71
      %s88 = sphi 0, %s72
      %s94 = sphi 0, %s96
      %s97 = sphi 0, %s94
      %s98 = sphi 0, %s97
      %s114 = sphi 0, %s98
      %s120 = sphi 0, %s122
      %s123 = sphi 0, %s120
      %s124 = sphi 0, %s123
      %s140 = sphi 0, %s124
      %s148 = sphi 0, %s150
      %s151 = sphi 0, %s148
      %s152 = sphi 0, %s151
      %s168 = sphi 0, %s152
    $region4: #{tpu_custom_call.1} parent=1 // loop_header_branch
      %23 = sbr.rel (%p21) target = $region8
    $region5: #{tpu_custom_call.1} parent=1 // loop_body
      %s25 = ssub.s32 %s20, 1
      %s26 = ssub.s32 %s20, 2
      %s33 = sadd.s32 1, %s28
      %p34 = scmp.ge.s32.totalorder %s33, 2
      %s35 = scalar_select %p34, 0, %s33
      %s36 = sadd.s32 1, %s27
      %s37 = scalar_select %p34, %s36, %s27
      %p38 = scmp.ge.s32.totalorder %s37, 1
      %s39 = scalar_select %p38, 0, %s37
      %s40 = ssub.s32 %s27, %s39
      %p41 = scmp.eq.s32.totalorder %s40, 0
      %s43 = sadd.s32 %s42, 1
      %s44 = scalar_select %p41, %s42, %s43
      %p47 = pneg %p41
      %p48 = scmp.eq.s32.totalorder %s20, 1
      %p49 = por %p47, %p48
      %p50 = scmp.ne.s32.totalorder %s42, %s45
      %p51 = scmp.eq.s32.totalorder %s20, 0
      %p52 = por %p50, %p51
      %p53 = scmp.ne.s32.totalorder %s42, %s45
      %p54 = scmp.eq.s32.totalorder %s25, 1
      %p55 = por %p53, %p54
      %p56 = scmp.ne.s32.totalorder %s45, %s46
      %p57 = scmp.eq.s32.totalorder %s25, 0
      %p58 = por %p56, %p57
      %p59 = scmp.ne.s32.totalorder %s45, %s46
      %p60 = scmp.eq.s32.totalorder %s26, 1
      %p61 = por %p59, %p60
      %p63 = scmp.ne.s32.totalorder %s46, %s62
      %p64 = scmp.eq.s32.totalorder %s26, 0
      %p65 = por %p63, %p64
      %s66 = ssub.s32 %s28, %s35
      %p67 = scmp.eq.s32.totalorder %s66, 0
      %s69 = sadd.s32 %s68, 1
      %s70 = scalar_select %p67, %s68, %s69
      %p73 = pneg %p67
      %p74 = scmp.eq.s32.totalorder %s20, 1
      %p75 = por %p73, %p74
      %p76 = scmp.ne.s32.totalorder %s68, %s71
      %p77 = scmp.eq.s32.totalorder %s20, 0
      %p78 = por %p76, %p77
      %p79 = scmp.ne.s32.totalorder %s68, %s71
      %p80 = scmp.eq.s32.totalorder %s25, 1
      %p81 = por %p79, %p80
      %p82 = scmp.ne.s32.totalorder %s71, %s72
      %p83 = scmp.eq.s32.totalorder %s25, 0
      %p84 = por %p82, %p83
      %p85 = scmp.ne.s32.totalorder %s71, %s72
      %p86 = scmp.eq.s32.totalorder %s26, 1
      %p87 = por %p85, %p86
      %p89 = scmp.ne.s32.totalorder %s72, %s88
      %p90 = scmp.eq.s32.totalorder %s26, 0
      %p91 = por %p89, %p90
      %s92 = ssub.s32 %s27, %s39
      %p93 = scmp.eq.s32.totalorder %s92, 0
      %s95 = sadd.s32 %s94, 1
      %s96 = scalar_select %p93, %s94, %s95
      %p99 = pneg %p93
      %p100 = scmp.eq.s32.totalorder %s20, 1
      %p101 = por %p99, %p100
      %p102 = scmp.ne.s32.totalorder %s94, %s97
      %p103 = scmp.eq.s32.totalorder %s20, 0
      %p104 = por %p102, %p103
      %p105 = scmp.ne.s32.totalorder %s94, %s97
      %p106 = scmp.eq.s32.totalorder %s25, 1
      %p107 = por %p105, %p106
      %p108 = scmp.ne.s32.totalorder %s97, %s98
      %p109 = scmp.eq.s32.totalorder %s25, 0
      %p110 = por %p108, %p109
      %p111 = scmp.ne.s32.totalorder %s97, %s98
      %p112 = scmp.eq.s32.totalorder %s26, 1
      %p113 = por %p111, %p112
      %p115 = scmp.ne.s32.totalorder %s98, %s114
      %p116 = scmp.eq.s32.totalorder %s26, 0
      %p117 = por %p115, %p116
      %s118 = ssub.s32 %s28, %s35
      %p119 = scmp.eq.s32.totalorder %s118, 0
      %s121 = sadd.s32 %s120, 1
      %s122 = scalar_select %p119, %s120, %s121
      %p125 = pneg %p119
      %p126 = scmp.eq.s32.totalorder %s20, 1
      %p127 = por %p125, %p126
      %p128 = scmp.ne.s32.totalorder %s120, %s123
      %p129 = scmp.eq.s32.totalorder %s20, 0
      %p130 = por %p128, %p129
      %p131 = scmp.ne.s32.totalorder %s120, %s123
      %p132 = scmp.eq.s32.totalorder %s25, 1
      %p133 = por %p131, %p132
      %p134 = scmp.ne.s32.totalorder %s123, %s124
      %p135 = scmp.eq.s32.totalorder %s25, 0
      %p136 = por %p134, %p135
      %p137 = scmp.ne.s32.totalorder %s123, %s124
      %p138 = scmp.eq.s32.totalorder %s26, 1
      %p139 = por %p137, %p138
      %p141 = scmp.ne.s32.totalorder %s124, %s140
      %p142 = scmp.eq.s32.totalorder %s26, 0
      %p143 = por %p141, %p142
      %s144 = ssub.s32 %s27, %s39
      %s145 = ssub.s32 %s28, %s35
      %s146 = sor.u32 %s144, %s145
      %p147 = scmp.eq.s32.totalorder %s146, 0
      %s149 = sadd.s32 %s148, 1
      %s150 = scalar_select %p147, %s148, %s149
      %p153 = pneg %p147
      %p154 = scmp.eq.s32.totalorder %s20, 1
      %p155 = por %p153, %p154
      %p156 = scmp.ne.s32.totalorder %s148, %s151
      %p157 = scmp.eq.s32.totalorder %s20, 0
      %p158 = por %p156, %p157
      %p159 = scmp.ne.s32.totalorder %s148, %s151
      %p160 = scmp.eq.s32.totalorder %s25, 1
      %p161 = por %p159, %p160
      %p162 = scmp.ne.s32.totalorder %s151, %s152
      %p163 = scmp.eq.s32.totalorder %s25, 0
      %p164 = por %p162, %p163
      %p165 = scmp.ne.s32.totalorder %s151, %s152
      %p166 = scmp.eq.s32.totalorder %s26, 1
      %p167 = por %p165, %p166
      %p169 = scmp.ne.s32.totalorder %s152, %s168
      %p170 = scmp.eq.s32.totalorder %s26, 0
      %p171 = por %p169, %p170
      %p172 = scmp.le.s32.totalorder 1, %s20
      %p173 = scmp.lt.s32.totalorder %s20, 3
      %p174 = pnand %p172, %p173
      %p175 = pneg %p174
      // Predicated region
      $region9: #{tpu_custom_call.1} parent=5 // pred_check
        _
      $region10: #{tpu_custom_call.1} parent=5 // pred_check_branch
        %177 = sbr.rel (%p174) target = $region12
      $region11: #{tpu_custom_call.1} parent=5 // pred_region
        %s178 = ssub.s32 %s20, 1
        // Predicated region
        $region13: #{tpu_custom_call.1} parent=11 // pred_check
          %p179 = pneg %p58
        $region14: #{tpu_custom_call.1} parent=11 // pred_check_branch
          %181 = sbr.rel (%p179) target = $region16
        $region15: #{tpu_custom_call.1} parent=11 // pred_region
          %183 = vsyncadd [#allocation3], 0
          %s184 = smul.addr %s29, 8
          %s185 = scalar_lea.hbm %s0, %s184
          %s187 = sshll.u32 %s185, 4
          %s188 = int_to_ptr.hbm [resolvable:$true] %s187
          %s189 = sshll.u32 [#allocation2], 4
          %s190 = int_to_ptr.vmem [resolvable:$true] %s189
          %192 = dma.hbm_to_vmem [thread:$0]  %s188, 128, %s190, [#allocation3]
        $region16: #{tpu_custom_call.1} parent=11 // pred_fallthru
          _
        // Predicated region
        $region17: #{tpu_custom_call.1} parent=11 // pred_check
          %p193 = pneg %p110
        $region18: #{tpu_custom_call.1} parent=11 // pred_check_branch
          %195 = sbr.rel (%p193) target = $region20
        $region19: #{tpu_custom_call.1} parent=11 // pred_region
          %197 = vsyncadd [#allocation6], 0
          %s198 = smul.addr %s29, 8
          %s199 = scalar_lea.hbm %s2, %s198
          %s201 = sshll.u32 %s199, 4
          %s202 = int_to_ptr.hbm [resolvable:$true] %s201
          %s203 = sshll.u32 [#allocation7], 4
          %s204 = int_to_ptr.vmem [resolvable:$true] %s203
          %206 = dma.hbm_to_vmem [thread:$0]  %s202, 128, %s204, [#allocation6]
        $region20: #{tpu_custom_call.1} parent=11 // pred_fallthru
          _
      $region12: #{tpu_custom_call.1} parent=5 // pred_fallthru
        _
      %p207 = scmp.lt.s32.totalorder %s20, 2
      // Predicated region
      $region21: #{tpu_custom_call.1} parent=5 // pred_check
        %p208 = pneg %p207
      $region22: #{tpu_custom_call.1} parent=5 // pred_check_branch
        %210 = sbr.rel (%p208) target = $region24
      $region23: #{tpu_custom_call.1} parent=5 // pred_region
        // Predicated region
        $region25: #{tpu_custom_call.1} parent=23 // pred_check
          %p211 = pneg %p78
        $region26: #{tpu_custom_call.1} parent=23 // pred_check_branch
          %213 = sbr.rel (%p211) target = $region28
        $region27: #{tpu_custom_call.1} parent=23 // pred_region
          %s214 = sand.u32 %s20, 1
          %s215 = scalar_lea.sflag [#allocation6], %s214
          %s216 = sand.u32 %s68, 1
          %s217 = smul.addr %s216, 32
          %s218 = scalar_lea.vmem [#allocation5], %s217
          %220 = vsyncadd %s215, 0
          %s221 = smul.addr %s28, 8
          %s222 = scalar_lea.hbm %s1, %s221
          %s223 = sshll.u32 %s222, 4
          %s224 = int_to_ptr.hbm [resolvable:$true] %s223
          %s225 = sshll.u32 %s218, 4
          %s226 = int_to_ptr.vmem [resolvable:$true] %s225
          %231 = dma.hbm_to_vmem [thread:$0]  %s224, 512, %s226, %s215, 256, 128, 8
        $region28: #{tpu_custom_call.1} parent=23 // pred_fallthru
          _
        // Predicated region
        $region29: #{tpu_custom_call.1} parent=23 // pred_check
          %p232 = pneg %p130
        $region30: #{tpu_custom_call.1} parent=23 // pred_check_branch
          %234 = sbr.rel (%p232) target = $region32
        $region31: #{tpu_custom_call.1} parent=23 // pred_region
          %s235 = sand.u32 %s120, 1
          %s236 = scalar_lea.sflag [#allocation9], %s235
          %s237 = sand.u32 %s120, 1
          %s238 = smul.addr %s237, 64
          %s239 = scalar_lea.vmem [#allocation8], %s238
          %241 = vsyncadd %s236, 0
          %s242 = smul.addr %s28, 8
          %s243 = scalar_lea.hbm %s3, %s242
          %s244 = sshll.u32 %s243, 4
          %s245 = int_to_ptr.hbm [resolvable:$true] %s244
          %s246 = sshll.u32 %s239, 4
          %s247 = int_to_ptr.vmem [resolvable:$true] %s246
          %252 = dma.hbm_to_vmem [thread:$0]  %s245, 1024, %s247, %s236, 256, 128, 8
        $region32: #{tpu_custom_call.1} parent=23 // pred_fallthru
          _
      $region24: #{tpu_custom_call.1} parent=5 // pred_fallthru
        _
      %p253 = scmp.le.s32.totalorder 1, %s20
      %p254 = scmp.lt.s32.totalorder %s20, 3
      %p255 = pnand %p253, %p254
      %p256 = pneg %p255
      // Predicated region
      $region33: #{tpu_custom_call.1} parent=5 // pred_check
        _
      $region34: #{tpu_custom_call.1} parent=5 // pred_check_branch
        %258 = sbr.rel (%p255) target = $region36
      $region35: #{tpu_custom_call.1} parent=5 // pred_region
        %s259 = ssub.s32 %s20, 1
        // Predicated region
        $region37: #{tpu_custom_call.1} parent=35 // pred_check
          %p260 = pneg %p58
        $region38: #{tpu_custom_call.1} parent=35 // pred_check_branch
          %262 = sbr.rel (%p260) target = $region40
        $region39: #{tpu_custom_call.1} parent=35 // pred_region
          %264 = dma.done [#allocation3], 128
        $region40: #{tpu_custom_call.1} parent=35 // pred_fallthru
          _
        %s265 = sand.u32 %s25, 1
        %s266 = scalar_lea.sflag [#allocation6], %s265
        %s267 = sand.u32 %s71, 1
        %s268 = smul.addr %s267, 32
        %s269 = scalar_lea.vmem [#allocation5], %s268
        // Predicated region
        $region41: #{tpu_custom_call.1} parent=35 // pred_check
          %p270 = pneg %p84
        $region42: #{tpu_custom_call.1} parent=35 // pred_check_branch
          %272 = sbr.rel (%p270) target = $region44
        $region43: #{tpu_custom_call.1} parent=35 // pred_region
          %274 = dma.done %s266, 512
        $region44: #{tpu_custom_call.1} parent=35 // pred_fallthru
          _
        // Predicated region
        $region45: #{tpu_custom_call.1} parent=35 // pred_check
          %p275 = pneg %p110
        $region46: #{tpu_custom_call.1} parent=35 // pred_check_branch
          %277 = sbr.rel (%p275) target = $region48
        $region47: #{tpu_custom_call.1} parent=35 // pred_region
          %279 = dma.done [#allocation6], 128
        $region48: #{tpu_custom_call.1} parent=35 // pred_fallthru
          _
        %s280 = sand.u32 %s123, 1
        %s281 = scalar_lea.sflag [#allocation9], %s280
        %s282 = sand.u32 %s123, 1
        %s283 = smul.addr %s282, 64
        %s284 = scalar_lea.vmem [#allocation8], %s283
        // Predicated region
        $region49: #{tpu_custom_call.1} parent=35 // pred_check
          %p285 = pneg %p136
        $region50: #{tpu_custom_call.1} parent=35 // pred_check_branch
          %287 = sbr.rel (%p285) target = $region52
        $region51: #{tpu_custom_call.1} parent=35 // pred_region
          %289 = dma.done %s281, 1024
        $region52: #{tpu_custom_call.1} parent=35 // pred_fallthru
          _
        %p290 = pneg %p58
        %p291 = pneg %p55
        %s292 = sand.u32 %s25, 1
        %s293 = scalar_lea.sflag [#allocation6], %s292
        %s294 = sand.u32 %s71, 1
        %s295 = smul.addr %s294, 32
        %s296 = scalar_lea.vmem [#allocation5], %s295
        %p297 = pneg %p84
        %p298 = pneg %p81
        %p299 = pneg %p110
        %p300 = pneg %p107
        %s301 = sand.u32 %s123, 1
        %s302 = scalar_lea.sflag [#allocation9], %s301
        %s303 = sand.u32 %s123, 1
        %s304 = smul.addr %s303, 64
        %s305 = scalar_lea.vmem [#allocation8], %s304
        %p306 = pneg %p136
        %p307 = pneg %p133
        %p308 = pneg %p164
        %p309 = pneg %p161
        %s310 = sand.u32 %s151, 1
        %s311 = scalar_lea.sflag [#allocation4], %s310
        %s312 = sand.u32 %s151, 1
        %s313 = smul.addr %s312, 8
        %s314 = scalar_lea.vmem [#allocation10], %s313
        %v315 = vld [vmem:[#allocation2] sm:$0xff]
        %v316 = vld [vmem:[%s269] sm:$0xff]
        %v317 = vld [vmem:[%s269 + $0x8] sm:$0xff]
        %v318 = vld [vmem:[%s269 + $0x10] sm:$0xff]
        %v319 = vld [vmem:[%s269 + $0x18] sm:$0xff]
        %vm320 = vcmask 261120
        %v322 = vsel %vm320, %v315, 0
        %324 = vmatpush.msra.mxu0 0.0
        %325 = vmatpush.msra.mxu0 0.0
        %326 = vmatpush.msra.mxu0 0.0
        %327 = vmatpush.msra.mxu0 0.0
        %328 = vmatpush.msra.mxu0 0.0
        %329 = vmatpush.msra.mxu0 0.0
        %330 = vmatpush.msra.mxu0 0.0
        %331 = vmatpush.msra.mxu0 0.0
        %332 = vmatpush.msra.mxu0 0.0
        %333 = vmatpush.msra.mxu0 0.0
        %334 = vmatpush.msra.mxu0 0.0
        %335 = vmatpush.msra.mxu0 0.0
        %336 = vmatpush.msra.mxu0 %v319
        %337 = vmatpush.msra.mxu0 %v318
        %338 = vmatpush.msra.mxu0 %v317
        %339 = vmatpush.msra.mxu0 %v316
        %340 = vmatmul.f32.gmra.mxu0 %v322
        %v341 = vpop.f32.mrf.mxu0
        %v342 = vadd.f32 0.0, %v341
        %343 = vdwg.mxu0
        %v344 = vmul.f32 %v342, 0.0625
        %v345 = vld [vmem:[#allocation7] sm:$0xff]
        %v346 = vld [vmem:[%s284] sm:$0xff]
        %v347 = vld [vmem:[%s284 + $0x8] sm:$0xff]
        %v348 = vld [vmem:[%s284 + $0x10] sm:$0xff]
        %v349 = vld [vmem:[%s284 + $0x18] sm:$0xff]
        %v350 = vld [vmem:[%s284 + $0x20] sm:$0xff]
        %v351 = vld [vmem:[%s284 + $0x28] sm:$0xff]
        %v352 = vld [vmem:[%s284 + $0x30] sm:$0xff]
        %v353 = vld [vmem:[%s284 + $0x38] sm:$0xff]
        %vm354 = vcmask 523264
        %v356 = vsel %vm354, %v345, 0
        %358 = vmatpush.msra.mxu0 0.0
        %359 = vmatpush.msra.mxu0 0.0
        %360 = vmatpush.msra.mxu0 0.0
        %361 = vmatpush.msra.mxu0 0.0
        %362 = vmatpush.msra.mxu0 0.0
        %363 = vmatpush.msra.mxu0 0.0
        %364 = vmatpush.msra.mxu0 0.0
        %365 = vmatpush.msra.mxu0 0.0
        %366 = vmatpush.msra.mxu0 %v353
        %367 = vmatpush.msra.mxu0 %v352
        %368 = vmatpush.msra.mxu0 %v351
        %369 = vmatpush.msra.mxu0 %v350
        %370 = vmatpush.msra.mxu0 %v349
        %371 = vmatpush.msra.mxu0 %v348
        %372 = vmatpush.msra.mxu0 %v347
        %373 = vmatpush.msra.mxu0 %v346
        %374 = vmatmul.f32.gmra.mxu0 %v356
        %v375 = vpop.f32.mrf.mxu0
        %v376 = vadd.f32 0.0, %v375
        %377 = vdwg.mxu0
        %v378 = vmul.f32 %v344, %v376
        %379 = vst [vmem:[%s314] sm:$0xff] %v378
        %s380 = sand.u32 %s151, 1
        %s381 = scalar_lea.sflag [#allocation4], %s380
        %s382 = sand.u32 %s151, 1
        %s383 = smul.addr %s382, 8
        %s384 = scalar_lea.vmem [#allocation10], %s383
        // Predicated region
        $region53: #{tpu_custom_call.1} parent=35 // pred_check
          %p385 = pneg %p161
        $region54: #{tpu_custom_call.1} parent=35 // pred_check_branch
          %387 = sbr.rel (%p385) target = $region56
        $region55: #{tpu_custom_call.1} parent=35 // pred_region
          %389 = vsyncadd %s381, 0
          %s390 = smul.addr %s29, 2
          %s391 = sadd.s32 %s30, %s390
          %s392 = smul.addr %s391, 8
          %s393 = scalar_lea.hbm %s4, %s392
          %s395 = sshll.u32 %s384, 4
          %s396 = int_to_ptr.vmem [resolvable:$true] %s395
          %s397 = sshll.u32 %s393, 4
          %s398 = int_to_ptr.hbm [resolvable:$true] %s397
          %400 = dma.vmem_to_hbm [thread:$0]  %s396, 128, %s398, %s381
        $region56: #{tpu_custom_call.1} parent=35 // pred_fallthru
          _
      $region36: #{tpu_custom_call.1} parent=5 // pred_fallthru
        _
      %p401 = scmp.le.s32.totalorder 2, %s20
      // Predicated region
      $region57: #{tpu_custom_call.1} parent=5 // pred_check
        %p402 = pneg %p401
      $region58: #{tpu_custom_call.1} parent=5 // pred_check_branch
        %404 = sbr.rel (%p402) target = $region60
      $region59: #{tpu_custom_call.1} parent=5 // pred_region
        %s405 = ssub.s32 %s20, 2
        // Predicated region
        $region61: #{tpu_custom_call.1} parent=59 // pred_check
          %p406 = pneg %p167
        $region62: #{tpu_custom_call.1} parent=59 // pred_check_branch
          %408 = sbr.rel (%p406) target = $region64
        $region63: #{tpu_custom_call.1} parent=59 // pred_region
          %s409 = sand.u32 %s152, 1
          %s410 = scalar_lea.sflag [#allocation4], %s409
          %s411 = sand.u32 %s152, 1
          %s412 = smul.addr %s411, 8
          %s413 = scalar_lea.vmem [#allocation10], %s412
          %415 = dma.done %s410, 128
        $region64: #{tpu_custom_call.1} parent=59 // pred_fallthru
          _
      $region60: #{tpu_custom_call.1} parent=5 // pred_fallthru
        _
    $region6: #{tpu_custom_call.1} parent=1 // loop_footer
      %s24 = sadd.s32 1, %s20
    $region7: #{tpu_custom_call.1} parent=1 // loop_footer_branch
      %19 = sbr.rel target = $region3
    $region8: #{tpu_custom_call.1} parent=1 // loop_exit
      _
    %416 = vsyncpa [#allocation3], 1
    %s417 = scalar_lea.sflag [#allocation3], 1
    %418 = vsyncpa %s417, 1
    %419 = vsyncpa [#allocation6], 1
    %s420 = scalar_lea.sflag [#allocation6], 1
    %421 = vsyncpa %s420, 1
    %422 = vsyncpa [#allocation9], 1
    %s423 = scalar_lea.sflag [#allocation9], 1
    %424 = vsyncpa %s423, 1
    %425 = vsyncpa [#allocation4], 1
    %s426 = scalar_lea.sflag [#allocation4], 1
    %427 = vsyncpa %s426, 1

</llo_original>
